<compile_context>
chip_gen: v7x
topology: tpu7x:2x2x1
jax: 0.10.0
libtpu: 0.0.40
codegen_flags: <defaults>
</compile_context>

<pallas_src>
import functools

import jax
import jax.numpy as jnp
from jax.experimental import pallas as pl
from jax.experimental.pallas import tpu as pltpu


# ----------------------------- Pallas kernel ---------------------------------
def fusion_head_kernel(scs_ref,                 # [bt, 2*de2] bf16  == [s_c | s_s]
                       wa_ref, wb_ref,          # [2*de2, 2*NH] bf16 packed weights
                       b12_ref,                 # [1, 2*NH] f32 merged bias (b1|b2)
                       wh_ref,                  # [NH, NH] bf16  (fc2's h1 part)
                       wo_ref, bo_ref,          # [NH, NO] bf16, [1, NO] f32
                       out_ref,                 # [bt, NO] bf16
                       *, bf16_elementwise):
    de2 = scs_ref.shape[-1] // 2
    nh = wh_ref.shape[0]

    scs = scs_ref[...]                                        # bf16 [bt, 2*de2]

    # Rebuild the elementwise product without any lane concat:
    # roll([s_c|s_s], de2) = [s_s|s_c]  ->  scs * rolled = [m | m]  (m = s_c*s_s).
    # The duplicated half is multiplied by zero weight rows inside wb.
    if bf16_elementwise:                         # v6e / v7x: bf16 VPU available
        prod = scs * pltpu.roll(scs, shift=de2, axis=1)
    else:                                        # v5e and older: no bf16 VALU
        s32 = scs.astype(jnp.float32)
        prod = (s32 * pltpu.roll(s32, shift=de2, axis=1)).astype(scs.dtype)

    # One merged contraction producing BOTH fc1's and fc2's s-part (lane-padded
    # to two full 128-lane blocks), with the merged bias folded in immediately.
    t = (jnp.dot(scs, wa_ref[...], preferred_element_type=jnp.float32)
         + jnp.dot(prod, wb_ref[...], preferred_element_type=jnp.float32)
         + b12_ref[...])

    # h1 = relu(fc1(s))        (columns [0, NH): only the first d_e are real,
    #                           padding lanes stay exactly zero)
    h1 = jnp.maximum(t[:, :nh], 0.0)

    # h2 = relu(fc2(cat([s, h1], -1)))  ==  relu(t_fc2 + h1 @ Wh)
    h2 = jnp.maximum(
        t[:, nh:]
        + jnp.dot(h1.astype(jnp.bfloat16), wh_ref[...],
                  preferred_element_type=jnp.float32),
        0.0)

    # fc_out, lane-padded to NO (=128) output lanes -> unmasked lane-dense store.
    out = jnp.dot(h2.astype(jnp.bfloat16), wo_ref[...],
                  preferred_element_type=jnp.float32) + bo_ref[...]
    out_ref[...] = out.astype(out_ref.dtype)


# ------------------------------ wrapper ---------------------------------------
def _round_up(x, m):
    return ((x + m - 1) // m) * m


def _cdiv(a, b):
    return -(-a // b)


def _pack_fusion_weights(w1, b1, w2, b2, wo, bo, de2, d_e):
    """Fold the (s_c - s_s) term, merge fc1/fc2's s-contraction and biases,
    and lane-pad every output block to a 128-lane boundary."""
    NH = _round_up(max(d_e, 1), 128)          # padded hidden width
    C = wo.shape[1]
    NO = _round_up(max(C, 1), 128)            # padded class width

    wc1, ws1, wd1, wm1 = (w1[0:de2], w1[de2:2 * de2],
                          w1[2 * de2:3 * de2], w1[3 * de2:4 * de2])
    wc2, ws2, wd2, wm2 = (w2[0:de2], w2[de2:2 * de2],
                          w2[2 * de2:3 * de2], w2[3 * de2:4 * de2])
    wh = w2[4 * de2:4 * de2 + d_e]            # acts on h1

    # fold:  (s_c - s_s) @ Wd  ->  s_c @ (Wc + Wd) + s_s @ (Ws - Wd)
    wa = jnp.zeros((2 * de2, 2 * NH), jnp.float32)
    wa = wa.at[0:de2, 0:d_e].set(wc1 + wd1)
    wa = wa.at[0:de2, NH:NH + d_e].set(wc2 + wd2)
    wa = wa.at[de2:2 * de2, 0:d_e].set(ws1 - wd1)
    wa = wa.at[de2:2 * de2, NH:NH + d_e].set(ws2 - wd2)

    # product weights: only the first de2 rows are live (the rolled duplicate of
    # m in the kernel hits the zero rows), zero flops are free MXU slack.
    wb = jnp.zeros((2 * de2, 2 * NH), jnp.float32)
    wb = wb.at[0:de2, 0:d_e].set(wm1)
    wb = wb.at[0:de2, NH:NH + d_e].set(wm2)

    # merged bias [b1 | b2], lane-padded
    b12 = jnp.zeros((1, 2 * NH), jnp.float32)
    b12 = b12.at[:, 0:d_e].set(b1)
    b12 = b12.at[:, NH:NH + d_e].set(b2)

    wh_p = jnp.zeros((NH, NH), jnp.float32).at[0:d_e, 0:d_e].set(wh)
    wo_p = jnp.zeros((NH, NO), jnp.float32).at[0:d_e, 0:C].set(wo)
    bo_p = jnp.zeros((1, NO), jnp.float32).at[:, 0:C].set(bo)

    return (wa.astype(jnp.bfloat16), wb.astype(jnp.bfloat16), b12,
            wh_p.astype(jnp.bfloat16), wo_p.astype(jnp.bfloat16), bo_p,
            NH, NO)


def fusion_head(s_c, s_s, w1, b1, w2, b2, wo, bo, *, b_tile=2048):
    B, de2 = s_c.shape
    d_e = wo.shape[0]
    C = wo.shape[1]

    wa, wb, b12, wh_p, wo_p, bo_p, NH, NO = _pack_fusion_weights(
        w1, b1, w2, b2, wo, bo, de2, d_e)

    # ---- batch tiling ------------------------------------------------------
    B_eff = _round_up(B, 8)
    bt = max(8, min(_round_up(int(b_tile), 8), B_eff))   # defensive 8-multiple
    if B_eff >= 16 and B_eff <= bt:
        # keep >= 2 grid steps so v7x's second TensorCore gets work
        bt = _round_up(_cdiv(B_eff, 2), 8)
    n_tiles = _cdiv(B_eff, bt)
    B_pad = bt * n_tiles

    # one lane-dense bf16 activation stream [s_c | s_s]; concat + row-pad + cast
    # done wrapper-side so the kernel never does a lane concat.
    scs = jnp.concatenate([s_c, s_s], axis=-1)
    if B_pad != B:
        scs = jnp.pad(scs, ((0, B_pad - B), (0, 0)))
    scs = scs.astype(jnp.bfloat16)

    # ---- static kernel config ---------------------------------------------
    try:
        kind = jax.devices()[0].device_kind.lower()
    except Exception:  # pragma: no cover
        kind = ""
    bf16_ew = ("v6" in kind) or ("v7" in kind)   # bf16 VPU on v6e / v7x only

    kernel = functools.partial(fusion_head_kernel, bf16_elementwise=bf16_ew)

    flops = (2 * B_pad * (2 * de2) * (2 * NH) * 2      # two accumulated K dots
             + 2 * B_pad * NH * NH                     # h1 @ Wh
             + 2 * B_pad * NH * NO)                    # h2 @ Wo
    bytes_accessed = (B_pad * 2 * de2 * 2              # bf16 activations in
                      + B_pad * NO * 2                 # bf16 logits out
                      + 2 * (2 * de2) * (2 * NH) * 2   # wa + wb (bf16)
                      + (NH * NH + NH * NO) * 2        # wh + wo (bf16)
                      + (2 * NH + NO) * 4)             # f32 biases

    out = pl.pallas_call(
        kernel,
        out_shape=jax.ShapeDtypeStruct((B_pad, NO), jnp.bfloat16),
        grid_spec=pltpu.PrefetchScalarGridSpec(
            num_scalar_prefetch=0,
            grid=(n_tiles,),
            in_specs=[
                pl.BlockSpec((bt, 2 * de2), lambda i: (i, 0)),     # scs
                pl.BlockSpec((2 * de2, 2 * NH), lambda i: (0, 0)),  # W_A (resident)
                pl.BlockSpec((2 * de2, 2 * NH), lambda i: (0, 0)),  # W_B (resident)
                pl.BlockSpec((1, 2 * NH), lambda i: (0, 0)),        # b1|b2
                pl.BlockSpec((NH, NH), lambda i: (0, 0)),           # W2_h
                pl.BlockSpec((NH, NO), lambda i: (0, 0)),           # W_out (padded)
                pl.BlockSpec((1, NO), lambda i: (0, 0)),            # b_out (padded)
            ],
            out_specs=pl.BlockSpec((bt, NO), lambda i: (i, 0)),
        ),
        compiler_params=pltpu.CompilerParams(
            dimension_semantics=("parallel",),
            vmem_limit_bytes=(64 << 20) if bt > 2048 else (32 << 20)),
        cost_estimate=pl.CostEstimate(
            flops=int(flops), transcendentals=0,
            bytes_accessed=int(bytes_accessed)),
    )(scs, wa, wb, b12, wh_p, wo_p, bo_p)

    return out[:B, :C].astype(jnp.float32)


# ------------------------------- JAX glue -------------------------------------
def get_rep_mask(lengths, seq_len):
    # rep_mask[i, j, 0] = 1.0 if j < lengths[i] else 0.0   (matches torch version)
    pos = jnp.arange(seq_len, dtype=jnp.int32)[None, :]
    mask = (pos < lengths[:, None]).astype(jnp.float32)
    return mask[:, :, None]


def simple_encoder(x_g, x_s, rep_mask, w_enc):
    # TODO(synk): stand-in for the external SimpleEncoder/SentenceEncoder module.
    x = jnp.concatenate([x_g, x_s], axis=-1)                       # [B, L, 2*word_dim]
    denom = jnp.maximum(rep_mask.sum(axis=1), 1.0)                 # [B, 1]
    pooled = (x * rep_mask).sum(axis=1) / denom                    # [B, 2*word_dim]
    return jnp.tanh(pooled @ w_enc)                                # [B, 2*d_e]


def reference_head(s_c, s_s, w1, b1, w2, b2, wo, bo):
    s = jnp.concatenate([s_c, s_s, s_c - s_s, s_c * s_s], axis=-1)
    h1 = jnp.maximum(s @ w1 + b1, 0.0)
    h2 = jnp.maximum(jnp.concatenate([s, h1], axis=-1) @ w2 + b2, 0.0)
    return h2 @ wo + bo


# --------------------------------- main ----------------------------------------
if __name__ == "__main__":
    # small config consistent with the module's __init__
    B, L = 2, 8
    vocab, word_dim = 50, 16
    d_e, class_size = 32, 4
    enc_dim = 2 * d_e              # SimpleEncoder output size
    fc_dim = 4 * enc_dim           # = 4 * 2 * d_e (args.simple_encoder path)

    key = jax.random.PRNGKey(0)
    keys = jax.random.split(key, 12)

    # embeddings (deterministic synthetic init instead of GloVe / emoji / ss vectors)
    glove_emb = jax.random.uniform(keys[0], (vocab, word_dim), jnp.float32, -0.05, 0.05)
    ss_emb = jax.random.uniform(keys[1], (vocab, word_dim), jnp.float32, -0.05, 0.05)

    # encoder stand-in projection
    w_enc = jax.random.normal(keys[2], (2 * word_dim, enc_dim), jnp.float32) * 0.1

    # fusion-head parameters (nn.Linear shapes, stored transposed: y = x @ W + b)
    w1 = jax.random.normal(keys[3], (fc_dim, d_e), jnp.float32) * 0.05
    b1 = jax.random.normal(keys[4], (1, d_e), jnp.float32) * 0.05
    w2 = jax.random.normal(keys[5], (fc_dim + d_e, d_e), jnp.float32) * 0.05
    b2 = jax.random.normal(keys[6], (1, d_e), jnp.float32) * 0.05
    wo = jax.random.normal(keys[7], (d_e, class_size), jnp.float32) * 0.05
    bo = jax.random.normal(keys[8], (1, class_size), jnp.float32) * 0.05

    # synthetic batch: context / sentence token ids + lengths
    seq_c = jax.random.randint(keys[9], (B, L), 0, vocab, jnp.int32)
    seq_s = jax.random.randint(keys[10], (B, L), 0, vocab, jnp.int32)
    lens_c = jnp.array([L, L - 3], dtype=jnp.int32)
    lens_s = jnp.array([L - 2, L], dtype=jnp.int32)

    # --- forward pass ---
    x_c_g = glove_emb[seq_c]
    x_c_s = ss_emb[seq_c]
    x_s_g = glove_emb[seq_s]
    x_s_s = ss_emb[seq_s]

    rep_mask_c = get_rep_mask(lens_c, L)
    rep_mask_s = get_rep_mask(lens_s, L)

    s_c = simple_encoder(x_c_g, x_c_s, rep_mask_c, w_enc)   # [B, 2*d_e]
    s_s = simple_encoder(x_s_g, x_s_s, rep_mask_s, w_enc)   # [B, 2*d_e]

    logits = fusion_head(s_c, s_s, w1, b1, w2, b2, wo, bo)
    logits = jax.block_until_ready(logits)

    # f32 reference; kernel uses bf16 MXU operands / bf16 output with f32
    # accumulation, so use a correspondingly relaxed tolerance (values O(0.05)).
    ref = reference_head(s_c, s_s, w1, b1, w2, b2, wo, bo)
    assert logits.shape == (B, class_size)
    assert jnp.allclose(logits, ref, atol=2e-2, rtol=2e-2), (
        jnp.max(jnp.abs(logits - ref)))

    print("KERNEL_OK")
</pallas_src>

<mosaic_0001>
module attributes {stable_mosaic.version = 11 : i64} {
  func.func @fusion_head_kernel(%arg0: i32, %arg1: memref<8x128xbf16, #tpu.memory_space<vmem>>, %arg2: memref<128x256xbf16, #tpu.memory_space<vmem>>, %arg3: memref<128x256xbf16, #tpu.memory_space<vmem>>, %arg4: memref<1x256xf32, #tpu.memory_space<vmem>>, %arg5: memref<128x128xbf16, #tpu.memory_space<vmem>>, %arg6: memref<128x128xbf16, #tpu.memory_space<vmem>>, %arg7: memref<1x128xf32, #tpu.memory_space<vmem>>, %arg8: memref<8x128xbf16, #tpu.memory_space<vmem>>) attributes {dimension_semantics = [#tpu.dimension_semantics<parallel>], iteration_bounds = array<i64: 1>, scalar_prefetch = 0 : i64, scratch_operands = 0 : i64, tpu.core_type = #tpu.core_type<tc>, window_params = [{transform_indices = @transform_0, window_bounds = array<i64: 8, 128>}, {pipeline_mode = #tpu.pipeline_mode<synchronous>, transform_indices = @transform_1, window_bounds = array<i64: 128, 256>}, {pipeline_mode = #tpu.pipeline_mode<synchronous>, transform_indices = @transform_2, window_bounds = array<i64: 128, 256>}, {pipeline_mode = #tpu.pipeline_mode<synchronous>, transform_indices = @transform_3, window_bounds = array<i64: 1, 256>}, {pipeline_mode = #tpu.pipeline_mode<synchronous>, transform_indices = @transform_4, window_bounds = array<i64: 128, 128>}, {pipeline_mode = #tpu.pipeline_mode<synchronous>, transform_indices = @transform_5, window_bounds = array<i64: 128, 128>}, {pipeline_mode = #tpu.pipeline_mode<synchronous>, transform_indices = @transform_6, window_bounds = array<i64: 1, 128>}, {transform_indices = @transform_7, window_bounds = array<i64: 8, 128>}]} {
    %c0 = arith.constant 0 : index
    %c0_0 = arith.constant 0 : index
    %0 = vector.load %arg1[%c0, %c0_0] : memref<8x128xbf16, #tpu.memory_space<vmem>>, vector<8x128xbf16>
    %1 = arith.extf %0 : vector<8x128xbf16> to vector<8x128xf32>
    %c64_i32 = arith.constant 64 : i32
    %2 = tpu.dynamic_rotate %1 by %c64_i32 dim 1 : vector<8x128xf32>, i32 -> vector<8x128xf32>
    %3 = arith.mulf %1, %2 : vector<8x128xf32>
    %4 = arith.truncf %3 : vector<8x128xf32> to vector<8x128xbf16>
    %c0_1 = arith.constant 0 : index
    %c0_2 = arith.constant 0 : index
    %5 = vector.load %arg2[%c0_1, %c0_2] : memref<128x256xbf16, #tpu.memory_space<vmem>>, vector<128x256xbf16>
    %cst = arith.constant dense<0.000000e+00> : vector<8x256xf32>
    %6 = tpu.matmul %0, %5, %cst {dimension_numbers = #tpu.dot_dimension_numbers<[1], [0], [0], [1], [0, 0, 1, 1], [], []>} : vector<8x128xbf16>, vector<128x256xbf16>, vector<8x256xf32> -> vector<8x256xf32>
    %c0_3 = arith.constant 0 : index
    %c0_4 = arith.constant 0 : index
    %7 = vector.load %arg3[%c0_3, %c0_4] : memref<128x256xbf16, #tpu.memory_space<vmem>>, vector<128x256xbf16>
    %cst_5 = arith.constant dense<0.000000e+00> : vector<8x256xf32>
    %8 = tpu.matmul %4, %7, %cst_5 {dimension_numbers = #tpu.dot_dimension_numbers<[1], [0], [0], [1], [0, 0, 1, 1], [], []>} : vector<8x128xbf16>, vector<128x256xbf16>, vector<8x256xf32> -> vector<8x256xf32>
    %9 = arith.addf %6, %8 : vector<8x256xf32>
    %c0_6 = arith.constant 0 : index
    %c0_7 = arith.constant 0 : index
    %10 = vector.load %arg4[%c0_6, %c0_7] : memref<1x256xf32, #tpu.memory_space<vmem>>, vector<1x256xf32>
    %11 = vector.broadcast %10 : vector<1x256xf32> to vector<8x256xf32>
    %12 = arith.addf %9, %11 : vector<8x256xf32>
    %13 = vector.extract_strided_slice %12 {offsets = [0, 0], sizes = [8, 128], strides = [1, 1]} : vector<8x256xf32> to vector<8x128xf32>
    %cst_8 = arith.constant 0.000000e+00 : f32
    %14 = vector.broadcast %cst_8 : f32 to vector<8x128xf32>
    %15 = arith.maximumf %13, %14 : vector<8x128xf32>
    %16 = vector.extract_strided_slice %12 {offsets = [0, 128], sizes = [8, 128], strides = [1, 1]} : vector<8x256xf32> to vector<8x128xf32>
    %17 = arith.truncf %15 : vector<8x128xf32> to vector<8x128xbf16>
    %c0_9 = arith.constant 0 : index
    %c0_10 = arith.constant 0 : index
    %18 = vector.load %arg5[%c0_9, %c0_10] : memref<128x128xbf16, #tpu.memory_space<vmem>>, vector<128x128xbf16>
    %cst_11 = arith.constant dense<0.000000e+00> : vector<8x128xf32>
    %19 = tpu.matmul %17, %18, %cst_11 {dimension_numbers = #tpu.dot_dimension_numbers<[1], [0], [0], [1], [0, 0, 1, 1], [], []>} : vector<8x128xbf16>, vector<128x128xbf16>, vector<8x128xf32> -> vector<8x128xf32>
    %20 = arith.addf %16, %19 : vector<8x128xf32>
    %cst_12 = arith.constant 0.000000e+00 : f32
    %21 = vector.broadcast %cst_12 : f32 to vector<8x128xf32>
    %22 = arith.maximumf %20, %21 : vector<8x128xf32>
    %23 = arith.truncf %22 : vector<8x128xf32> to vector<8x128xbf16>
    %c0_13 = arith.constant 0 : index
    %c0_14 = arith.constant 0 : index
    %24 = vector.load %arg6[%c0_13, %c0_14] : memref<128x128xbf16, #tpu.memory_space<vmem>>, vector<128x128xbf16>
    %cst_15 = arith.constant dense<0.000000e+00> : vector<8x128xf32>
    %25 = tpu.matmul %23, %24, %cst_15 {dimension_numbers = #tpu.dot_dimension_numbers<[1], [0], [0], [1], [0, 0, 1, 1], [], []>} : vector<8x128xbf16>, vector<128x128xbf16>, vector<8x128xf32> -> vector<8x128xf32>
    %c0_16 = arith.constant 0 : index
    %c0_17 = arith.constant 0 : index
    %26 = vector.load %arg7[%c0_16, %c0_17] : memref<1x128xf32, #tpu.memory_space<vmem>>, vector<1x128xf32>
    %27 = vector.broadcast %26 : vector<1x128xf32> to vector<8x128xf32>
    %28 = arith.addf %25, %27 : vector<8x128xf32>
    %29 = arith.truncf %28 : vector<8x128xf32> to vector<8x128xbf16>
    %c0_18 = arith.constant 0 : index
    %c0_19 = arith.constant 0 : index
    %30 = vector.load %arg8[%c0_18, %c0_19] : memref<8x128xbf16, #tpu.memory_space<vmem>>, vector<8x128xbf16>
    tpu.vector_store %arg8[%c0_18, %c0_19], %29 {strides = array<i32>} : memref<8x128xbf16, #tpu.memory_space<vmem>>, vector<8x128xbf16>,
    return
  }
  func.func @transform_0(%arg0: i32) -> (i32, i32) {
    %c0_i32 = arith.constant 0 : i32
    %c0_i32_0 = arith.constant 0 : i32
    return %arg0, %c0_i32 : i32, i32
  }
  func.func @transform_1(%arg0: i32) -> (i32, i32) {
    %c0_i32 = arith.constant 0 : i32
    %c0_i32_0 = arith.constant 0 : i32
    %c0_i32_1 = arith.constant 0 : i32
    return %c0_i32, %c0_i32_0 : i32, i32
  }
  func.func @transform_2(%arg0: i32) -> (i32, i32) {
    %c0_i32 = arith.constant 0 : i32
    %c0_i32_0 = arith.constant 0 : i32
    %c0_i32_1 = arith.constant 0 : i32
    return %c0_i32, %c0_i32_0 : i32, i32
  }
  func.func @transform_3(%arg0: i32) -> (i32, i32) {
    %c0_i32 = arith.constant 0 : i32
    %c0_i32_0 = arith.constant 0 : i32
    %c0_i32_1 = arith.constant 0 : i32
    return %c0_i32, %c0_i32_0 : i32, i32
  }
  func.func @transform_4(%arg0: i32) -> (i32, i32) {
    %c0_i32 = arith.constant 0 : i32
    %c0_i32_0 = arith.constant 0 : i32
    %c0_i32_1 = arith.constant 0 : i32
    return %c0_i32, %c0_i32_0 : i32, i32
  }
  func.func @transform_5(%arg0: i32) -> (i32, i32) {
    %c0_i32 = arith.constant 0 : i32
    %c0_i32_0 = arith.constant 0 : i32
    %c0_i32_1 = arith.constant 0 : i32
    return %c0_i32, %c0_i32_0 : i32, i32
  }
  func.func @transform_6(%arg0: i32) -> (i32, i32) {
    %c0_i32 = arith.constant 0 : i32
    %c0_i32_0 = arith.constant 0 : i32
    %c0_i32_1 = arith.constant 0 : i32
    return %c0_i32, %c0_i32_0 : i32, i32
  }
  func.func @transform_7(%arg0: i32) -> (i32, i32) {
    %c0_i32 = arith.constant 0 : i32
    %c0_i32_0 = arith.constant 0 : i32
    return %arg0, %c0_i32 : i32, i32
  }
}

</mosaic_0001>

<llo_original>
// kernel: tpu_custom_call.1
$region0: #{tpu_custom_call.1}
  #allocation0 [shape = 'u32[]', space=smem, size = 0x4, offset = 0x4, fixed_abs, tag = 'smem constant byte address 0x4 - core index']
  #allocation1 [shape = 'u32[144,128]{1,0:T(1,128)}', space=vmem, size = 0x12000, scoped, tag = 'internal scratch']
  %s0 = inlined_call_operand.hbm [shape: bf16[8,128], index: 0, kind: input, shape index: {}]
  %s1 = inlined_call_operand.hbm [shape: bf16[128,256], index: 1, kind: input, shape index: {}]
  %s2 = inlined_call_operand.hbm [shape: bf16[128,256], index: 2, kind: input, shape index: {}]
  %s3 = inlined_call_operand.vmem [shape: f32[1,256], index: 3, kind: input, shape index: {}]
  %s4 = inlined_call_operand.hbm [shape: bf16[128,128], index: 4, kind: input, shape index: {}]
  %s5 = inlined_call_operand.hbm [shape: bf16[128,128], index: 5, kind: input, shape index: {}]
  %s6 = inlined_call_operand.vmem [shape: f32[1,128], index: 6, kind: input, shape index: {}]
  %s7 = inlined_call_operand.hbm [shape: bf16[8,128], index: 7, kind: output, shape index: {}]
  %s8 = sld [smem:[#allocation0]]
  $region58: #{tpu_custom_call.1} parent=0
    _
  %s10 = ssub.s32 1, %s8
  %s11 = scalar_select 0, %s10, %s8
  $region1: #{tpu_custom_call.1} parent=0
    #allocation2 [shape = 'u8[2048]{0}', space=vmem, size = 0x800, scoped, tag = 'input window, operand 0, single buffered']
    #allocation3 [shape = 's32[1]{0}', space=sflag, size = 0x4, scoped, tag = 'scoped memory for tpu_custom_call.1']
    #allocation4 [shape = 's32[1]{0}', space=sflag, size = 0x4, scoped, tag = 'scoped memory for tpu_custom_call.1']
    #allocation5 [shape = 'u8[65536]{0}', space=vmem, size = 0x10000, scoped, tag = 'input window, operand 1, single buffered']
    #allocation6 [shape = 's32[1]{0}', space=sflag, size = 0x4, scoped, tag = 'scoped memory for tpu_custom_call.1']
    #allocation7 [shape = 'u8[65536]{0}', space=vmem, size = 0x10000, scoped, tag = 'input window, operand 2, single buffered']
    #allocation8 [shape = 'u8[32768]{0}', space=vmem, size = 0x8000, scoped, tag = 'input window, operand 4, single buffered']
    #allocation9 [shape = 's32[1]{0}', space=sflag, size = 0x4, scoped, tag = 'scoped memory for tpu_custom_call.1']
    #allocation10 [shape = 'u8[32768]{0}', space=vmem, size = 0x8000, scoped, tag = 'input window, operand 5, single buffered']
    #allocation11 [shape = 'u8[2048]{0}', space=vmem, size = 0x800, scoped, tag = 'output window, operand 0, single buffered']
    %12 = vsyncpa [#allocation3], 0
    %13 = vsyncpa [#allocation6], 0
    %14 = vsyncpa [#allocation9], 0
    %15 = vsyncpa [#allocation4], 0
    // Predicated region
    $region2: #{tpu_custom_call.1} parent=1 // pred_check
      _
    $region3: #{tpu_custom_call.1} parent=1 // pred_check_branch
      %17 = sbr.rel (0) target = $region5
    $region4: #{tpu_custom_call.1} parent=1 // pred_region
      %s19 = ssub.s32 64, 64
      %20 = vsyncadd [#allocation3], %s19
      %s22 = sshll.u32 [#allocation2], 4
      %s23 = int_to_ptr.vmem [resolvable:$true] %s22
      %25 = dma.hbm_to_vmem [thread:$0]  %s0, 64, %s23, [#allocation3]
    $region5: #{tpu_custom_call.1} parent=1 // pred_fallthru
      _
    // Predicated region
    $region6: #{tpu_custom_call.1} parent=1 // pred_check
      _
    $region7: #{tpu_custom_call.1} parent=1 // pred_check_branch
      %27 = sbr.rel (0) target = $region9
    $region8: #{tpu_custom_call.1} parent=1 // pred_region
      %s29 = ssub.s32 2048, 2048
      %30 = vsyncadd [#allocation6], %s29
      %s31 = sshll.u32 [#allocation5], 4
      %s32 = int_to_ptr.vmem [resolvable:$true] %s31
      %37 = dma.hbm_to_vmem [thread:$0]  %s1, 2048, %s32, [#allocation6], 128, 128, 8
    $region9: #{tpu_custom_call.1} parent=1 // pred_fallthru
      _
    // Predicated region
    $region10: #{tpu_custom_call.1} parent=1 // pred_check
      _
    $region11: #{tpu_custom_call.1} parent=1 // pred_check_branch
      %39 = sbr.rel (0) target = $region13
    $region12: #{tpu_custom_call.1} parent=1 // pred_region
      %s41 = ssub.s32 2048, 2048
      %42 = vsyncadd [#allocation6], %s41
      %s43 = sshll.u32 [#allocation7], 4
      %s44 = int_to_ptr.vmem [resolvable:$true] %s43
      %49 = dma.hbm_to_vmem [thread:$0]  %s2, 2048, %s44, [#allocation6], 128, 128, 8
    $region13: #{tpu_custom_call.1} parent=1 // pred_fallthru
      _
    // Predicated region
    $region14: #{tpu_custom_call.1} parent=1 // pred_check
      _
    $region15: #{tpu_custom_call.1} parent=1 // pred_check_branch
      %51 = sbr.rel (0) target = $region17
    $region16: #{tpu_custom_call.1} parent=1 // pred_region
      _
    $region17: #{tpu_custom_call.1} parent=1 // pred_fallthru
      _
    // Predicated region
    $region18: #{tpu_custom_call.1} parent=1 // pred_check
      _
    $region19: #{tpu_custom_call.1} parent=1 // pred_check_branch
      %53 = sbr.rel (0) target = $region21
    $region20: #{tpu_custom_call.1} parent=1 // pred_region
      %s55 = ssub.s32 1024, 1024
      %56 = vsyncadd [#allocation9], %s55
      %s57 = sshll.u32 [#allocation8], 4
      %s58 = int_to_ptr.vmem [resolvable:$true] %s57
      %63 = dma.hbm_to_vmem [thread:$0]  %s4, 1024, %s58, [#allocation9], 64, 64, 4
    $region21: #{tpu_custom_call.1} parent=1 // pred_fallthru
      _
    // Predicated region
    $region22: #{tpu_custom_call.1} parent=1 // pred_check
      _
    $region23: #{tpu_custom_call.1} parent=1 // pred_check_branch
      %65 = sbr.rel (0) target = $region25
    $region24: #{tpu_custom_call.1} parent=1 // pred_region
      %s67 = ssub.s32 1024, 1024
      %68 = vsyncadd [#allocation9], %s67
      %s69 = sshll.u32 [#allocation10], 4
      %s70 = int_to_ptr.vmem [resolvable:$true] %s69
      %75 = dma.hbm_to_vmem [thread:$0]  %s5, 1024, %s70, [#allocation9], 64, 64, 4
    $region25: #{tpu_custom_call.1} parent=1 // pred_fallthru
      _
    // Predicated region
    $region26: #{tpu_custom_call.1} parent=1 // pred_check
      _
    $region27: #{tpu_custom_call.1} parent=1 // pred_check_branch
      %77 = sbr.rel (0) target = $region29
    $region28: #{tpu_custom_call.1} parent=1 // pred_region
      _
    $region29: #{tpu_custom_call.1} parent=1 // pred_fallthru
      _
    // Predicated region
    $region30: #{tpu_custom_call.1} parent=1 // pred_check
      _
    $region31: #{tpu_custom_call.1} parent=1 // pred_check_branch
      %79 = sbr.rel (0) target = $region33
    $region32: #{tpu_custom_call.1} parent=1 // pred_region
      %80 = dma.done [#allocation3], 64
    $region33: #{tpu_custom_call.1} parent=1 // pred_fallthru
      _
    // Predicated region
    $region34: #{tpu_custom_call.1} parent=1 // pred_check
      _
    $region35: #{tpu_custom_call.1} parent=1 // pred_check_branch
      %82 = sbr.rel (0) target = $region37
    $region36: #{tpu_custom_call.1} parent=1 // pred_region
      %83 = dma.done [#allocation6], 2048
    $region37: #{tpu_custom_call.1} parent=1 // pred_fallthru
      _
    // Predicated region
    $region38: #{tpu_custom_call.1} parent=1 // pred_check
      _
    $region39: #{tpu_custom_call.1} parent=1 // pred_check_branch
      %85 = sbr.rel (0) target = $region41
    $region40: #{tpu_custom_call.1} parent=1 // pred_region
      %86 = dma.done [#allocation6], 2048
    $region41: #{tpu_custom_call.1} parent=1 // pred_fallthru
      _
    // Predicated region
    $region42: #{tpu_custom_call.1} parent=1 // pred_check
      _
    $region43: #{tpu_custom_call.1} parent=1 // pred_check_branch
      %88 = sbr.rel (0) target = $region45
    $region44: #{tpu_custom_call.1} parent=1 // pred_region
      %89 = dma.done [#allocation9], 1024
    $region45: #{tpu_custom_call.1} parent=1 // pred_fallthru
      _
    // Predicated region
    $region46: #{tpu_custom_call.1} parent=1 // pred_check
      _
    $region47: #{tpu_custom_call.1} parent=1 // pred_check_branch
      %91 = sbr.rel (0) target = $region49
    $region48: #{tpu_custom_call.1} parent=1 // pred_region
      %92 = dma.done [#allocation9], 1024
    $region49: #{tpu_custom_call.1} parent=1 // pred_fallthru
      _
    %v94 = vld [vmem:[#allocation2] sm:$0xf]
    %v95 = vunpack.c.l.bf16 %v94
    %96 = vrot.lane.b32.xlu0 %v95, 64
    %v97 = vpop.permute.xlu0 %96
    %v98 = vmul.f32 %v95, %v97
    %v99 = vpack.c.bf16 %v98, %v98
    %v100 = vld [vmem:[#allocation5] sm:$0xff]
    %v101 = vld [vmem:[#allocation5 + $0x8] sm:$0xff]
    %v102 = vld [vmem:[#allocation5 + $0x10] sm:$0xff]
    %v103 = vld [vmem:[#allocation5 + $0x18] sm:$0xff]
    %v104 = vld [vmem:[#allocation5 + $0x20] sm:$0xff]
    %v105 = vld [vmem:[#allocation5 + $0x28] sm:$0xff]
    %v106 = vld [vmem:[#allocation5 + $0x30] sm:$0xff]
    %v107 = vld [vmem:[#allocation5 + $0x38] sm:$0xff]
    %v108 = vld [vmem:[#allocation5 + $0x40] sm:$0xff]
    %v109 = vld [vmem:[#allocation5 + $0x48] sm:$0xff]
    %v110 = vld [vmem:[#allocation5 + $0x50] sm:$0xff]
    %v111 = vld [vmem:[#allocation5 + $0x58] sm:$0xff]
    %v112 = vld [vmem:[#allocation5 + $0x60] sm:$0xff]
    %v113 = vld [vmem:[#allocation5 + $0x68] sm:$0xff]
    %v114 = vld [vmem:[#allocation5 + $0x70] sm:$0xff]
    %v115 = vld [vmem:[#allocation5 + $0x78] sm:$0xff]
    %v116 = vld [vmem:[#allocation7] sm:$0xff]
    %v117 = vld [vmem:[#allocation7 + $0x8] sm:$0xff]
    %v118 = vld [vmem:[#allocation7 + $0x10] sm:$0xff]
    %v119 = vld [vmem:[#allocation7 + $0x18] sm:$0xff]
    %v120 = vld [vmem:[#allocation7 + $0x20] sm:$0xff]
    %v121 = vld [vmem:[#allocation7 + $0x28] sm:$0xff]
    %v122 = vld [vmem:[#allocation7 + $0x30] sm:$0xff]
    %v123 = vld [vmem:[#allocation7 + $0x38] sm:$0xff]
    %v124 = vld [vmem:[#allocation7 + $0x40] sm:$0xff]
    %v125 = vld [vmem:[#allocation7 + $0x48] sm:$0xff]
    %v126 = vld [vmem:[#allocation7 + $0x50] sm:$0xff]
    %v127 = vld [vmem:[#allocation7 + $0x58] sm:$0xff]
    %v128 = vld [vmem:[#allocation7 + $0x60] sm:$0xff]
    %v129 = vld [vmem:[#allocation7 + $0x68] sm:$0xff]
    %v130 = vld [vmem:[#allocation7 + $0x70] sm:$0xff]
    %v131 = vld [vmem:[#allocation7 + $0x78] sm:$0xff]
    %v148 = vunpack.c.l.b16 %v116
    %v149 = vunpack.c.h.b16 %v116
    %v150 = vunpack.c.l.b16 %v117
    %v151 = vunpack.c.h.b16 %v117
    %v152 = vunpack.c.l.b16 %v118
    %v153 = vunpack.c.h.b16 %v118
    %v154 = vunpack.c.l.b16 %v119
    %v155 = vunpack.c.h.b16 %v119
    %v156 = vunpack.c.l.b16 %v120
    %v157 = vunpack.c.h.b16 %v120
    %v158 = vunpack.c.l.b16 %v121
    %v159 = vunpack.c.h.b16 %v121
    %v160 = vunpack.c.l.b16 %v122
    %v161 = vunpack.c.h.b16 %v122
    %v162 = vunpack.c.l.b16 %v123
    %v163 = vunpack.c.h.b16 %v123
    %v164 = vunpack.c.l.b16 %v124
    %v165 = vunpack.c.h.b16 %v124
    %v166 = vunpack.c.l.b16 %v125
    %v167 = vunpack.c.h.b16 %v125
    %v168 = vunpack.c.l.b16 %v126
    %v169 = vunpack.c.h.b16 %v126
    %v170 = vunpack.c.l.b16 %v127
    %v171 = vunpack.c.h.b16 %v127
    %v172 = vunpack.c.l.b16 %v128
    %v173 = vunpack.c.h.b16 %v128
    %v174 = vunpack.c.l.b16 %v129
    %v175 = vunpack.c.h.b16 %v129
    %v176 = vunpack.c.l.b16 %v130
    %v177 = vunpack.c.h.b16 %v130
    %v178 = vunpack.c.l.b16 %v131
    %v179 = vunpack.c.h.b16 %v131
    %v180 = vpack.c.b16 %v150, %v148
    %v181 = vpack.c.b16 %v151, %v149
    %v182 = vpack.c.b16 %v154, %v152
    %v183 = vpack.c.b16 %v155, %v153
    %v184 = vpack.c.b16 %v158, %v156
    %v185 = vpack.c.b16 %v159, %v157
    %v186 = vpack.c.b16 %v162, %v160
    %v187 = vpack.c.b16 %v163, %v161
    %v188 = vpack.c.b16 %v166, %v164
    %v189 = vpack.c.b16 %v167, %v165
    %v190 = vpack.c.b16 %v170, %v168
    %v191 = vpack.c.b16 %v171, %v169
    %v192 = vpack.c.b16 %v174, %v172
    %v193 = vpack.c.b16 %v175, %v173
    %v194 = vpack.c.b16 %v178, %v176
    %v195 = vpack.c.b16 %v179, %v177
    %212 = vmatprep.subr.bf16.mxu0 %v181
    %213 = vmatpush1.bf16.msra.mxu0 %v180
    %214 = vmatprep.subr.bf16.mxu0 %v183
    %215 = vmatpush1.bf16.msra.mxu0 %v182
    %216 = vmatprep.subr.bf16.mxu0 %v185
    %217 = vmatpush1.bf16.msra.mxu0 %v184
    %218 = vmatprep.subr.bf16.mxu0 %v187
    %219 = vmatpush1.bf16.msra.mxu0 %v186
    %220 = vmatprep.subr.bf16.mxu0 %v189
    %221 = vmatpush1.bf16.msra.mxu0 %v188
    %222 = vmatprep.subr.bf16.mxu0 %v191
    %223 = vmatpush1.bf16.msra.mxu0 %v190
    %224 = vmatprep.subr.bf16.mxu0 %v193
    %225 = vmatpush1.bf16.msra.mxu0 %v192
    %226 = vmatprep.subr.bf16.mxu0 %v195
    %227 = vmatpush1.bf16.msra.mxu0 %v194
    %228 = vmatprep.subr.bf16.mxu0 0
    %229 = vmatpush1.bf16.msra.mxu0 0
    %230 = vmatprep.subr.bf16.mxu0 0
    %231 = vmatpush1.bf16.msra.mxu0 0
    %232 = vmatprep.subr.bf16.mxu0 0
    %233 = vmatpush1.bf16.msra.mxu0 0
    %234 = vmatprep.subr.bf16.mxu0 0
    %235 = vmatpush1.bf16.msra.mxu0 0
    %236 = vmatprep.subr.bf16.mxu0 0
    %237 = vmatpush1.bf16.msra.mxu0 0
    %238 = vmatprep.subr.bf16.mxu0 0
    %239 = vmatpush1.bf16.msra.mxu0 0
    %240 = vmatprep.subr.bf16.mxu0 0
    %241 = vmatpush1.bf16.msra.mxu0 0
    %242 = vmatprep.subr.bf16.mxu0 0
    %243 = vmatpush1.bf16.msra.mxu0 0
    %244 = vmatprep.mubr.bf16.mxu0 0
    %245 = vmatmul.mubr.bf16.gmra.mrb[0].mxu0 %v99
    %v246 = vpop.f32.mrb[0].mxu0
    %v247 = vadd.f32 0.0, %v246
    %v248 = vpop.f32.mrb[0].mxu0
    %v249 = vadd.f32 0.0, %v248
    %v250 = vpop.f32.mrb[0].mxu0
    %v251 = vpop.f32.mrb[0].mxu0
    %252 = vdwg.mxu0
    %v269 = vunpack.c.l.b16 %v100
    %v270 = vunpack.c.h.b16 %v100
    %v271 = vunpack.c.l.b16 %v101
    %v272 = vunpack.c.h.b16 %v101
    %v273 = vunpack.c.l.b16 %v102
    %v274 = vunpack.c.h.b16 %v102
    %v275 = vunpack.c.l.b16 %v103
    %v276 = vunpack.c.h.b16 %v103
    %v277 = vunpack.c.l.b16 %v104
    %v278 = vunpack.c.h.b16 %v104
    %v279 = vunpack.c.l.b16 %v105
    %v280 = vunpack.c.h.b16 %v105
    %v281 = vunpack.c.l.b16 %v106
    %v282 = vunpack.c.h.b16 %v106
    %v283 = vunpack.c.l.b16 %v107
    %v284 = vunpack.c.h.b16 %v107
    %v285 = vunpack.c.l.b16 %v108
    %v286 = vunpack.c.h.b16 %v108
    %v287 = vunpack.c.l.b16 %v109
    %v288 = vunpack.c.h.b16 %v109
    %v289 = vunpack.c.l.b16 %v110
    %v290 = vunpack.c.h.b16 %v110
    %v291 = vunpack.c.l.b16 %v111
    %v292 = vunpack.c.h.b16 %v111
    %v293 = vunpack.c.l.b16 %v112
    %v294 = vunpack.c.h.b16 %v112
    %v295 = vunpack.c.l.b16 %v113
    %v296 = vunpack.c.h.b16 %v113
    %v297 = vunpack.c.l.b16 %v114
    %v298 = vunpack.c.h.b16 %v114
    %v299 = vunpack.c.l.b16 %v115
    %v300 = vunpack.c.h.b16 %v115
    %v301 = vpack.c.b16 %v271, %v269
    %v302 = vpack.c.b16 %v272, %v270
    %v303 = vpack.c.b16 %v275, %v273
    %v304 = vpack.c.b16 %v276, %v274
    %v305 = vpack.c.b16 %v279, %v277
    %v306 = vpack.c.b16 %v280, %v278
    %v307 = vpack.c.b16 %v283, %v281
    %v308 = vpack.c.b16 %v284, %v282
    %v309 = vpack.c.b16 %v287, %v285
    %v310 = vpack.c.b16 %v288, %v286
    %v311 = vpack.c.b16 %v291, %v289
    %v312 = vpack.c.b16 %v292, %v290
    %v313 = vpack.c.b16 %v295, %v293
    %v314 = vpack.c.b16 %v296, %v294
    %v315 = vpack.c.b16 %v299, %v297
    %v316 = vpack.c.b16 %v300, %v298
    %333 = vmatprep.subr.bf16.mxu0 %v302
    %334 = vmatpush1.bf16.msra.mxu0 %v301
    %335 = vmatprep.subr.bf16.mxu0 %v304
    %336 = vmatpush1.bf16.msra.mxu0 %v303
    %337 = vmatprep.subr.bf16.mxu0 %v306
    %338 = vmatpush1.bf16.msra.mxu0 %v305
    %339 = vmatprep.subr.bf16.mxu0 %v308
    %340 = vmatpush1.bf16.msra.mxu0 %v307
    %341 = vmatprep.subr.bf16.mxu0 %v310
    %342 = vmatpush1.bf16.msra.mxu0 %v309
    %343 = vmatprep.subr.bf16.mxu0 %v312
    %344 = vmatpush1.bf16.msra.mxu0 %v311
    %345 = vmatprep.subr.bf16.mxu0 %v314
    %346 = vmatpush1.bf16.msra.mxu0 %v313
    %347 = vmatprep.subr.bf16.mxu0 %v316
    %348 = vmatpush1.bf16.msra.mxu0 %v315
    %349 = vmatprep.subr.bf16.mxu0 0
    %350 = vmatpush1.bf16.msra.mxu0 0
    %351 = vmatprep.subr.bf16.mxu0 0
    %352 = vmatpush1.bf16.msra.mxu0 0
    %353 = vmatprep.subr.bf16.mxu0 0
    %354 = vmatpush1.bf16.msra.mxu0 0
    %355 = vmatprep.subr.bf16.mxu0 0
    %356 = vmatpush1.bf16.msra.mxu0 0
    %357 = vmatprep.subr.bf16.mxu0 0
    %358 = vmatpush1.bf16.msra.mxu0 0
    %359 = vmatprep.subr.bf16.mxu0 0
    %360 = vmatpush1.bf16.msra.mxu0 0
    %361 = vmatprep.subr.bf16.mxu0 0
    %362 = vmatpush1.bf16.msra.mxu0 0
    %363 = vmatprep.subr.bf16.mxu0 0
    %364 = vmatpush1.bf16.msra.mxu0 0
    %365 = vmatprep.mubr.bf16.mxu0 0
    %366 = vmatmul.mubr.bf16.gmra.mrb[0].mxu0 %v94
    %v367 = vpop.f32.mrb[0].mxu0
    %v368 = vadd.f32 %v247, %v367
    %v369 = vpop.f32.mrb[0].mxu0
    %v370 = vadd.f32 %v249, %v369
    %v371 = vpop.f32.mrb[0].mxu0
    %v372 = vpop.f32.mrb[0].mxu0
    %373 = vdwg.mxu0
    %v374 = vld [vmem:[%s3] sm:$0x3]
    %v376 = vlaneseq
    %v377 = vshrl.u32 %v376, 7
    %v378 = vsub.s32 0, %v377
    %v379 = vrot.slane %v374, %v378
    %v380 = vlaneseq
    %v381 = vshrl.u32 %v380, 7
    %v382 = vsub.s32 1, %v381
    %v383 = vrot.slane %v374, %v382
    %v386 = vadd.f32 %v368, %v379
    %v387 = vadd.f32 %v370, %v383
    %v388 = vmax.f32 %v386, 0.0
    %v389 = vpack.c.bf16 %v388, %v388
    %v390 = vld [vmem:[#allocation8] sm:$0xf]
    %v391 = vld [vmem:[#allocation8 + $0x4] sm:$0xf]
    %v392 = vld [vmem:[#allocation8 + $0x8] sm:$0xf]
    %v393 = vld [vmem:[#allocation8 + $0xc] sm:$0xf]
    %v394 = vld [vmem:[#allocation8 + $0x10] sm:$0xf]
    %v395 = vld [vmem:[#allocation8 + $0x14] sm:$0xf]
    %v396 = vld [vmem:[#allocation8 + $0x18] sm:$0xf]
    %v397 = vld [vmem:[#allocation8 + $0x1c] sm:$0xf]
    %v398 = vld [vmem:[#allocation8 + $0x20] sm:$0xf]
    %v399 = vld [vmem:[#allocation8 + $0x24] sm:$0xf]
    %v400 = vld [vmem:[#allocation8 + $0x28] sm:$0xf]
    %v401 = vld [vmem:[#allocation8 + $0x2c] sm:$0xf]
    %v402 = vld [vmem:[#allocation8 + $0x30] sm:$0xf]
    %v403 = vld [vmem:[#allocation8 + $0x34] sm:$0xf]
    %v404 = vld [vmem:[#allocation8 + $0x38] sm:$0xf]
    %v405 = vld [vmem:[#allocation8 + $0x3c] sm:$0xf]
    %v422 = vunpack.c.l.b16 %v390
    %v423 = vunpack.c.l.b16 %v391
    %v424 = vunpack.c.l.b16 %v392
    %v425 = vunpack.c.l.b16 %v393
    %v426 = vunpack.c.l.b16 %v394
    %v427 = vunpack.c.l.b16 %v395
    %v428 = vunpack.c.l.b16 %v396
    %v429 = vunpack.c.l.b16 %v397
    %v430 = vunpack.c.l.b16 %v398
    %v431 = vunpack.c.l.b16 %v399
    %v432 = vunpack.c.l.b16 %v400
    %v433 = vunpack.c.l.b16 %v401
    %v434 = vunpack.c.l.b16 %v402
    %v435 = vunpack.c.l.b16 %v403
    %v436 = vunpack.c.l.b16 %v404
    %v437 = vunpack.c.l.b16 %v405
    %v438 = vpack.c.b16 %v423, %v422
    %v439 = vpack.c.b16 %v425, %v424
    %v440 = vpack.c.b16 %v427, %v426
    %v441 = vpack.c.b16 %v429, %v428
    %v442 = vpack.c.b16 %v431, %v430
    %v443 = vpack.c.b16 %v433, %v432
    %v444 = vpack.c.b16 %v435, %v434
    %v445 = vpack.c.b16 %v437, %v436
    %454 = vmatprep.subr.bf16.mxu0 0
    %455 = vmatpush1.bf16.msra.mxu0 %v438
    %456 = vmatprep.subr.bf16.mxu0 0
    %457 = vmatpush1.bf16.msra.mxu0 %v439
    %458 = vmatprep.subr.bf16.mxu0 0
    %459 = vmatpush1.bf16.msra.mxu0 %v440
    %460 = vmatprep.subr.bf16.mxu0 0
    %461 = vmatpush1.bf16.msra.mxu0 %v441
    %462 = vmatprep.subr.bf16.mxu0 0
    %463 = vmatpush1.bf16.msra.mxu0 %v442
    %464 = vmatprep.subr.bf16.mxu0 0
    %465 = vmatpush1.bf16.msra.mxu0 %v443
    %466 = vmatprep.subr.bf16.mxu0 0
    %467 = vmatpush1.bf16.msra.mxu0 %v444
    %468 = vmatprep.subr.bf16.mxu0 0
    %469 = vmatpush1.bf16.msra.mxu0 %v445
    %470 = vmatprep.subr.bf16.mxu0 0
    %471 = vmatpush1.bf16.msra.mxu0 0
    %472 = vmatprep.subr.bf16.mxu0 0
    %473 = vmatpush1.bf16.msra.mxu0 0
    %474 = vmatprep.subr.bf16.mxu0 0
    %475 = vmatpush1.bf16.msra.mxu0 0
    %476 = vmatprep.subr.bf16.mxu0 0
    %477 = vmatpush1.bf16.msra.mxu0 0
    %478 = vmatprep.subr.bf16.mxu0 0
    %479 = vmatpush1.bf16.msra.mxu0 0
    %480 = vmatprep.subr.bf16.mxu0 0
    %481 = vmatpush1.bf16.msra.mxu0 0
    %482 = vmatprep.subr.bf16.mxu0 0
    %483 = vmatpush1.bf16.msra.mxu0 0
    %484 = vmatprep.subr.bf16.mxu0 0
    %485 = vmatpush1.bf16.msra.mxu0 0
    %486 = vmatprep.mubr.bf16.mxu0 0
    %487 = vmatmul.mubr.bf16.gmra.mrb[0].mxu0 %v389
    %v488 = vpop.f32.mrb[0].mxu0
    %v489 = vadd.f32 0.0, %v488
    %v490 = vpop.f32.mrb[0].mxu0
    %v491 = vpop.f32.mrb[0].mxu0
    %v492 = vpop.f32.mrb[0].mxu0
    %493 = vdwg.mxu0
    %v494 = vadd.f32 %v387, %v489
    %v495 = vmax.f32 %v494, 0.0
    %v496 = vpack.c.bf16 %v495, %v495
    %v497 = vld [vmem:[#allocation10] sm:$0xf]
    %v498 = vld [vmem:[#allocation10 + $0x4] sm:$0xf]
    %v499 = vld [vmem:[#allocation10 + $0x8] sm:$0xf]
    %v500 = vld [vmem:[#allocation10 + $0xc] sm:$0xf]
    %v501 = vld [vmem:[#allocation10 + $0x10] sm:$0xf]
    %v502 = vld [vmem:[#allocation10 + $0x14] sm:$0xf]
    %v503 = vld [vmem:[#allocation10 + $0x18] sm:$0xf]
    %v504 = vld [vmem:[#allocation10 + $0x1c] sm:$0xf]
    %v505 = vld [vmem:[#allocation10 + $0x20] sm:$0xf]
    %v506 = vld [vmem:[#allocation10 + $0x24] sm:$0xf]
    %v507 = vld [vmem:[#allocation10 + $0x28] sm:$0xf]
    %v508 = vld [vmem:[#allocation10 + $0x2c] sm:$0xf]
    %v509 = vld [vmem:[#allocation10 + $0x30] sm:$0xf]
    %v510 = vld [vmem:[#allocation10 + $0x34] sm:$0xf]
    %v511 = vld [vmem:[#allocation10 + $0x38] sm:$0xf]
    %v512 = vld [vmem:[#allocation10 + $0x3c] sm:$0xf]
    %v513 = vld [vmem:[%s6] sm:$0x1]
    %v515 = vlaneseq
    %v516 = vshrl.u32 %v515, 7
    %v517 = vsub.s32 0, %v516
    %v518 = vrot.slane %v513, %v517
    %v536 = vunpack.c.l.b16 %v497
    %v537 = vunpack.c.l.b16 %v498
    %v538 = vunpack.c.l.b16 %v499
    %v539 = vunpack.c.l.b16 %v500
    %v540 = vunpack.c.l.b16 %v501
    %v541 = vunpack.c.l.b16 %v502
    %v542 = vunpack.c.l.b16 %v503
    %v543 = vunpack.c.l.b16 %v504
    %v544 = vunpack.c.l.b16 %v505
    %v545 = vunpack.c.l.b16 %v506
    %v546 = vunpack.c.l.b16 %v507
    %v547 = vunpack.c.l.b16 %v508
    %v548 = vunpack.c.l.b16 %v509
    %v549 = vunpack.c.l.b16 %v510
    %v550 = vunpack.c.l.b16 %v511
    %v551 = vunpack.c.l.b16 %v512
    %v552 = vpack.c.b16 %v537, %v536
    %v553 = vpack.c.b16 %v539, %v538
    %v554 = vpack.c.b16 %v541, %v540
    %v555 = vpack.c.b16 %v543, %v542
    %v556 = vpack.c.b16 %v545, %v544
    %v557 = vpack.c.b16 %v547, %v546
    %v558 = vpack.c.b16 %v549, %v548
    %v559 = vpack.c.b16 %v551, %v550
    %568 = vmatprep.subr.bf16.mxu0 0
    %569 = vmatpush1.bf16.msra.mxu0 %v552
    %570 = vmatprep.subr.bf16.mxu0 0
    %571 = vmatpush1.bf16.msra.mxu0 %v553
    %572 = vmatprep.subr.bf16.mxu0 0
    %573 = vmatpush1.bf16.msra.mxu0 %v554
    %574 = vmatprep.subr.bf16.mxu0 0
    %575 = vmatpush1.bf16.msra.mxu0 %v555
    %576 = vmatprep.subr.bf16.mxu0 0
    %577 = vmatpush1.bf16.msra.mxu0 %v556
    %578 = vmatprep.subr.bf16.mxu0 0
    %579 = vmatpush1.bf16.msra.mxu0 %v557
    %580 = vmatprep.subr.bf16.mxu0 0
    %581 = vmatpush1.bf16.msra.mxu0 %v558
    %582 = vmatprep.subr.bf16.mxu0 0
    %583 = vmatpush1.bf16.msra.mxu0 %v559
    %584 = vmatprep.subr.bf16.mxu0 0
    %585 = vmatpush1.bf16.msra.mxu0 0
    %586 = vmatprep.subr.bf16.mxu0 0
    %587 = vmatpush1.bf16.msra.mxu0 0
    %588 = vmatprep.subr.bf16.mxu0 0
    %589 = vmatpush1.bf16.msra.mxu0 0
    %590 = vmatprep.subr.bf16.mxu0 0
    %591 = vmatpush1.bf16.msra.mxu0 0
    %592 = vmatprep.subr.bf16.mxu0 0
    %593 = vmatpush1.bf16.msra.mxu0 0
    %594 = vmatprep.subr.bf16.mxu0 0
    %595 = vmatpush1.bf16.msra.mxu0 0
    %596 = vmatprep.subr.bf16.mxu0 0
    %597 = vmatpush1.bf16.msra.mxu0 0
    %598 = vmatprep.subr.bf16.mxu0 0
    %599 = vmatpush1.bf16.msra.mxu0 0
    %600 = vmatprep.mubr.bf16.mxu0 0
    %601 = vmatmul.mubr.bf16.gmra.mrb[0].mxu0 %v496
    %v602 = vpop.f32.mrb[0].mxu0
    %v603 = vadd.f32 %v518, %v602
    %v604 = vpop.f32.mrb[0].mxu0
    %v605 = vpop.f32.mrb[0].mxu0
    %v606 = vpop.f32.mrb[0].mxu0
    %607 = vdwg.mxu0
    %v608 = vpack.c.bf16 %v603, %v603
    %609 = vst [vmem:[#allocation11] sm:$0xf] %v608
    // Predicated region
    $region50: #{tpu_custom_call.1} parent=1 // pred_check
      _
    $region51: #{tpu_custom_call.1} parent=1 // pred_check_branch
      %611 = sbr.rel (0) target = $region53
    $region52: #{tpu_custom_call.1} parent=1 // pred_region
      %s613 = ssub.s32 64, 64
      %614 = vsyncadd [#allocation4], %s613
      %s616 = sshll.u32 [#allocation11], 4
      %s617 = int_to_ptr.vmem [resolvable:$true] %s616
      %619 = dma.vmem_to_hbm [thread:$0]  %s617, 64, %s7, [#allocation4]
    $region53: #{tpu_custom_call.1} parent=1 // pred_fallthru
      _
    // Predicated region
    $region54: #{tpu_custom_call.1} parent=1 // pred_check
      _
    $region55: #{tpu_custom_call.1} parent=1 // pred_check_branch
      %621 = sbr.rel (0) target = $region57
    $region56: #{tpu_custom_call.1} parent=1 // pred_region
      %622 = dma.done [#allocation4], 64
    $region57: #{tpu_custom_call.1} parent=1 // pred_fallthru
      _
    %623 = vsyncpa [#allocation3], 1
    %624 = vsyncpa [#allocation6], 1
    %625 = vsyncpa [#allocation9], 1
    %626 = vsyncpa [#allocation4], 1

</llo_original>
